<compile_context>
chip_gen: v7x
topology: tpu7x:2x2x1
jax: 0.10.0
libtpu: 0.0.40
codegen_flags: <defaults>
</compile_context>

<pallas_src>
import functools

import jax
import jax.numpy as jnp
from jax import lax
from jax.experimental import pallas as pl
from jax.experimental.pallas import tpu as pltpu


def _self_attention_kernel(xq_ref, xk_ref, o_ref, acc_ref):
    """One (batch, query-tile) grid step.

    xq_ref : (1, C, TQ)  query-tile columns of x1
    xk_ref : (1, C, N)   full x1 for this batch element (keys / values)
    o_ref  : (1, C, N)   output block, resident across the query-tile axis
    acc_ref: (C, N) f32  VMEM accumulator scratch
    """
    qi = pl.program_id(1)

    @pl.when(qi == 0)
    def _init():
        acc_ref[...] = jnp.zeros_like(acc_ref)

    xq = xq_ref[0]                                     # (C, TQ) f32
    xk = xk_ref[0]                                     # (C, N)  f32

    xq_bf = xq.astype(jnp.bfloat16)
    xk_bf = xk.astype(jnp.bfloat16)

    # s = xq^T @ xk  -> (TQ, N): contraction over C expressed via
    # dimension_numbers (transposed LHS fed to the MXU directly, no XLU .T).
    s = lax.dot_general(
        xq_bf, xk_bf,
        dimension_numbers=(((0,), (0,)), ((), ())),
        preferred_element_type=jnp.float32,
    )                                                  # (TQ, N) f32

    # Numerically-stable softmax over the key axis, all f32 (VPU + EUP).
    m = jnp.max(s, axis=-1, keepdims=True)             # (TQ, 1)
    e = jnp.exp(s - m)                                 # (TQ, N)
    denom = jnp.sum(e, axis=-1, keepdims=True)         # (TQ, 1)
    inv = pl.reciprocal(denom, approx=True)            # EUP slot

    # Normalize and cast to bf16 in one elementwise pass (lane-broadcast of
    # the (TQ,1) reciprocal -- same pattern as the flash-attention epilogue),
    # then accumulate the partial product for this query tile.
    p_bf = (e * inv).astype(jnp.bfloat16)              # (TQ, N) bf16
    acc_ref[...] += jnp.dot(
        xq_bf, p_bf, preferred_element_type=jnp.float32
    )                                                  # (C, N) f32

    @pl.when(qi == pl.num_programs(1) - 1)
    def _finalize():
        o_ref[0] = acc_ref[...].astype(o_ref.dtype)


def _pick_tile(n, tq):
    """Choose a query-tile size that satisfies the (8,128) BlockSpec rule."""
    if tq is not None:
        if n % tq != 0 or (tq != n and tq % 128 != 0):
            raise ValueError(f"tq={tq} must divide N={n} and be a multiple "
                             f"of 128 (or equal N)")
        return tq
    for cand in (512, 256, 128):
        if n % cand == 0:
            return cand
    return n  # small / odd N: single full-width tile (block dim == array dim)


@functools.partial(jax.jit, static_argnames=("tq",))
def self_attention(x, tq=None):
    """x: (b, c, w, h) float32 -> (b, c, w*h) float32 (matches the PyTorch module)."""
    b, c, w, h = x.shape
    n = w * h
    x1 = x.reshape(b, c, n)

    tq = _pick_tile(n, tq)
    nq = n // tq

    return pl.pallas_call(
        _self_attention_kernel,
        out_shape=jax.ShapeDtypeStruct((b, c, n), x.dtype),
        grid_spec=pltpu.PrefetchScalarGridSpec(
            num_scalar_prefetch=0,
            grid=(b, nq),
            in_specs=[
                # query-tile columns of x1 (changes with qi)
                pl.BlockSpec((1, c, tq), lambda bi, qi: (bi, 0, qi)),
                # full x1 for this batch (block index constant across qi -> no re-DMA)
                pl.BlockSpec((1, c, n), lambda bi, qi: (bi, 0, 0)),
            ],
            out_specs=pl.BlockSpec((1, c, n), lambda bi, qi: (bi, 0, 0)),
            scratch_shapes=[pltpu.VMEM((c, n), jnp.float32)],
        ),
        compiler_params=pltpu.CompilerParams(
            dimension_semantics=("parallel", "arbitrary"),
            vmem_limit_bytes=48 * 1024 * 1024,  # < v7x's 64 MiB physical VMEM
        ),
        cost_estimate=pl.CostEstimate(
            flops=4 * b * c * n * n,
            transcendentals=b * n * n,
            bytes_accessed=3 * b * c * n * 4,
        ),
    )(x1, x1)


def _reference(x):
    b, c, w, h = x.shape
    x1 = x.reshape(b, c, -1)                        # (b, c, N)
    x2 = jnp.transpose(x1, (0, 2, 1))               # (b, N, c)
    s = jnp.einsum("bnc,bcm->bnm", x2, x1)          # (b, N, N)
    p = jax.nn.softmax(s, axis=-1)
    return jnp.einsum("bcn,bnm->bcm", x1, p)        # (b, c, N)


if __name__ == "__main__":
    key = jax.random.PRNGKey(0)
    b, c, w, h = 2, 4, 16, 16                       # N = 256
    x = jax.random.normal(key, (b, c, w, h), dtype=jnp.float32)

    ref = _reference(x)

    # multi-tile path: N=256 with TQ=128 -> 2 query tiles (exercises the
    # accumulator init / accumulate / finalize sequence)
    out = jax.block_until_ready(self_attention(x, tq=128))
    assert out.shape == (b, c, w * h), out.shape
    # bf16 MXU operands + approx reciprocal -> loosened tolerance vs pure f32
    assert jnp.allclose(out, ref, atol=5e-2, rtol=5e-2), float(
        jnp.max(jnp.abs(out - ref))
    )

    # default (auto) tile size: single 256-wide tile
    out2 = jax.block_until_ready(self_attention(x))
    assert jnp.allclose(out2, ref, atol=5e-2, rtol=5e-2), float(
        jnp.max(jnp.abs(out2 - ref))
    )

    print("KERNEL_OK")
</pallas_src>

<mosaic_0001>
module attributes {stable_mosaic.version = 11 : i64} {
  func.func @_self_attention_kernel(%arg0: i32, %arg1: i32, %arg2: memref<1x4x128xf32, #tpu.memory_space<vmem>>, %arg3: memref<1x4x256xf32, #tpu.memory_space<vmem>>, %arg4: memref<1x4x256xf32, #tpu.memory_space<vmem>>, %arg5: memref<4x256xf32, #tpu.memory_space<vmem>>) attributes {dimension_semantics = [#tpu.dimension_semantics<parallel>, #tpu.dimension_semantics<arbitrary>], iteration_bounds = array<i64: 2, 2>, scalar_prefetch = 0 : i64, scratch_operands = 1 : i64, tpu.core_type = #tpu.core_type<tc>, window_params = [{transform_indices = @transform_0, window_bounds = array<i64: 1, 4, 128>}, {transform_indices = @transform_1, window_bounds = array<i64: 1, 4, 256>}, {transform_indices = @transform_2, window_bounds = array<i64: 1, 4, 256>}]} {
    %c0_i32 = arith.constant 0 : i32
    %0 = arith.cmpi eq, %arg1, %c0_i32 : i32
    %1 = arith.extui %0 : i1 to i32
    %c0_i32_0 = arith.constant 0 : i32
    %2 = arith.cmpi ne, %1, %c0_i32_0 : i32
    scf.if %2 {
      %cst_14 = arith.constant 0.000000e+00 : f32
      %28 = vector.broadcast %cst_14 : f32 to vector<4x256xf32>
      %c0_15 = arith.constant 0 : index
      %c0_16 = arith.constant 0 : index
      %29 = vector.load %arg5[%c0_15, %c0_16] : memref<4x256xf32, #tpu.memory_space<vmem>>, vector<4x256xf32>
      tpu.vector_store %arg5[%c0_15, %c0_16], %28 {strides = array<i32>} : memref<4x256xf32, #tpu.memory_space<vmem>>, vector<4x256xf32>,
    } else {
    }
    %c0 = arith.constant 0 : index
    %c0_1 = arith.constant 0 : index
    %c0_2 = arith.constant 0 : index
    %3 = vector.load %arg2[%c0, %c0_1, %c0_2] : memref<1x4x128xf32, #tpu.memory_space<vmem>>, vector<1x4x128xf32>
    %4 = vector.shape_cast %3 : vector<1x4x128xf32> to vector<4x128xf32>
    %c0_3 = arith.constant 0 : index
    %c0_4 = arith.constant 0 : index
    %c0_5 = arith.constant 0 : index
    %5 = vector.load %arg3[%c0_3, %c0_4, %c0_5] : memref<1x4x256xf32, #tpu.memory_space<vmem>>, vector<1x4x256xf32>
    %6 = vector.shape_cast %5 : vector<1x4x256xf32> to vector<4x256xf32>
    %7 = arith.truncf %4 : vector<4x128xf32> to vector<4x128xbf16>
    %8 = arith.truncf %6 : vector<4x256xf32> to vector<4x256xbf16>
    %cst = arith.constant dense<0.000000e+00> : vector<128x256xf32>
    %9 = tpu.matmul %7, %8, %cst {dimension_numbers = #tpu.dot_dimension_numbers<[0], [0], [1], [1], [0, 1, 1, 1], [], []>} : vector<4x128xbf16>, vector<4x256xbf16>, vector<128x256xf32> -> vector<128x256xf32>
    %cst_6 = arith.constant dense<0xFF800000> : vector<128xf32>
    %10 = vector.multi_reduction <maximumf>, %9, %cst_6 [1] : vector<128x256xf32> to vector<128xf32>
    %11 = vector.shape_cast %10 : vector<128xf32> to vector<128x1xf32>
    %12 = vector.broadcast %11 : vector<128x1xf32> to vector<128x256xf32>
    %13 = arith.subf %9, %12 : vector<128x256xf32>
    %14 = math.exp %13 : vector<128x256xf32>
    %cst_7 = arith.constant dense<0.000000e+00> : vector<128xf32>
    %15 = vector.multi_reduction <add>, %14, %cst_7 [1] : vector<128x256xf32> to vector<128xf32>
    %16 = vector.shape_cast %15 : vector<128xf32> to vector<128x1xf32>
    %17 = tpu.reciprocal %16 {approx = true} : vector<128x1xf32> -> vector<128x1xf32>
    %18 = vector.broadcast %17 : vector<128x1xf32> to vector<128x256xf32>
    %19 = arith.mulf %14, %18 : vector<128x256xf32>
    %20 = arith.truncf %19 : vector<128x256xf32> to vector<128x256xbf16>
    %c0_8 = arith.constant 0 : index
    %c0_9 = arith.constant 0 : index
    %21 = vector.load %arg5[%c0_8, %c0_9] : memref<4x256xf32, #tpu.memory_space<vmem>>, vector<4x256xf32>
    %cst_10 = arith.constant dense<0.000000e+00> : vector<4x256xf32>
    %22 = tpu.matmul %7, %20, %cst_10 {dimension_numbers = #tpu.dot_dimension_numbers<[1], [0], [0], [1], [0, 0, 1, 1], [], []>} : vector<4x128xbf16>, vector<128x256xbf16>, vector<4x256xf32> -> vector<4x256xf32>
    %23 = arith.addf %21, %22 : vector<4x256xf32>
    %c0_11 = arith.constant 0 : index
    %c0_12 = arith.constant 0 : index
    %24 = vector.load %arg5[%c0_11, %c0_12] : memref<4x256xf32, #tpu.memory_space<vmem>>, vector<4x256xf32>
    tpu.vector_store %arg5[%c0_11, %c0_12], %23 {strides = array<i32>} : memref<4x256xf32, #tpu.memory_space<vmem>>, vector<4x256xf32>,
    %c1_i32 = arith.constant 1 : i32
    %25 = arith.cmpi eq, %arg1, %c1_i32 : i32
    %26 = arith.extui %25 : i1 to i32
    %c0_i32_13 = arith.constant 0 : i32
    %27 = arith.cmpi ne, %26, %c0_i32_13 : i32
    scf.if %27 {
      %c0_14 = arith.constant 0 : index
      %c0_15 = arith.constant 0 : index
      %28 = vector.load %arg5[%c0_14, %c0_15] : memref<4x256xf32, #tpu.memory_space<vmem>>, vector<4x256xf32>
      %c0_16 = arith.constant 0 : index
      %c0_17 = arith.constant 0 : index
      %c0_18 = arith.constant 0 : index
      %29 = vector.load %arg4[%c0_16, %c0_17, %c0_18] : memref<1x4x256xf32, #tpu.memory_space<vmem>>, vector<1x4x256xf32>
      %30 = vector.shape_cast %29 : vector<1x4x256xf32> to vector<4x256xf32>
      %31 = vector.shape_cast %28 : vector<4x256xf32> to vector<1x4x256xf32>
      tpu.vector_store %arg4[%c0_16, %c0_17, %c0_18], %31 {strides = array<i32>} : memref<1x4x256xf32, #tpu.memory_space<vmem>>, vector<1x4x256xf32>,
    } else {
    }
    return
  }
  func.func @transform_0(%arg0: i32, %arg1: i32) -> (i32, i32, i32) {
    %c0_i32 = arith.constant 0 : i32
    %c0_i32_0 = arith.constant 0 : i32
    return %arg0, %c0_i32, %arg1 : i32, i32, i32
  }
  func.func @transform_1(%arg0: i32, %arg1: i32) -> (i32, i32, i32) {
    %c0_i32 = arith.constant 0 : i32
    %c0_i32_0 = arith.constant 0 : i32
    %c0_i32_1 = arith.constant 0 : i32
    return %arg0, %c0_i32, %c0_i32_0 : i32, i32, i32
  }
  func.func @transform_2(%arg0: i32, %arg1: i32) -> (i32, i32, i32) {
    %c0_i32 = arith.constant 0 : i32
    %c0_i32_0 = arith.constant 0 : i32
    %c0_i32_1 = arith.constant 0 : i32
    return %arg0, %c0_i32, %c0_i32_0 : i32, i32, i32
  }
}

</mosaic_0001>

<llo_original>
// kernel: self_attention.1
$region0: #{self_attention.1}
  #allocation0 [shape = 'u32[]', space=smem, size = 0x4, offset = 0x4, fixed_abs, tag = 'smem constant byte address 0x4 - core index']
  #allocation1 [shape = 'u32[144,128]{1,0:T(1,128)}', space=vmem, size = 0x12000, scoped, tag = 'internal scratch']
  #allocation2 [shape = 'f32[4,256]{1,0:T(4,128)}', space=vmem, size = 0x1000, scoped, tag = 'scratch operand']
  %s0 = inlined_call_operand.vmem [shape: f32[2,4,256], index: 0, kind: input, shape index: {}, may-alias: {0,1}]
  %s1 = inlined_call_operand.vmem [shape: f32[2,4,256], index: 1, kind: input, shape index: {}, may-alias: {0,1}]
  %s2 = inlined_call_operand.hbm [shape: f32[2,4,256], index: 2, kind: output, shape index: {}]
  %s3 = sld [smem:[#allocation0]]
  $region49: #{self_attention.1} parent=0
    _
  %s5 = ssub.s32 1, %s3
  %s6 = scalar_select 0, %s5, %s3
  $region1: #{self_attention.1} parent=0
    #allocation3 [shape = 'u8[8192]{0}', space=vmem, size = 0x2000, scoped, tag = 'output window, operand 0']
    #allocation4 [shape = 's32[2]{0}', space=sflag, size = 0x8, scoped, tag = 'scoped memory for self_attention.1']
    %7 = vsyncpa [#allocation4], 0
    %s8 = scalar_lea.sflag [#allocation4], 1
    %9 = vsyncpa %s8, 0
    loop: start=0, step=1, limit=6
    $region2: #{self_attention.1} parent=1 // loop_pre_header
      _
    $region3: #{self_attention.1} parent=1 // loop_header
      %s11 = sphi 0, %s15
      %p12 = scmp.ge.s32.totalorder %s11, 6
      %s18 = sphi 0, %s30
      %s19 = sphi 0, %s26
      %s20 = sphi 0, %s18
      %s21 = sphi 0, %s19
      %s22 = sphi 0, %s20
      %s23 = sphi 0, %s21
      %s35 = sphi 0, %s37
      %s38 = sphi 0, %s35
      %s39 = sphi 0, %s38
      %s55 = sphi 0, %s39
      %s61 = sphi 0, %s63
      %s64 = sphi 0, %s61
      %s65 = sphi 0, %s64
      %s81 = sphi 0, %s65
      %s87 = sphi 0, %s89
      %s90 = sphi 0, %s87
      %s91 = sphi 0, %s90
      %s107 = sphi 0, %s91
    $region4: #{self_attention.1} parent=1 // loop_header_branch
      %14 = sbr.rel (%p12) target = $region8
    $region5: #{self_attention.1} parent=1 // loop_body
      %s16 = ssub.s32 %s11, 1
      %s17 = ssub.s32 %s11, 2
      %s24 = sadd.s32 1, %s19
      %p25 = scmp.ge.s32.totalorder %s24, 2
      %s26 = scalar_select %p25, 0, %s24
      %s27 = sadd.s32 1, %s18
      %s28 = scalar_select %p25, %s27, %s18
      %p29 = scmp.ge.s32.totalorder %s28, 2
      %s30 = scalar_select %p29, 0, %s28
      %s31 = ssub.s32 %s18, %s30
      %s32 = ssub.s32 %s19, %s26
      %s33 = sor.u32 %s31, %s32
      %p34 = scmp.eq.s32.totalorder %s33, 0
      %s36 = sadd.s32 %s35, 1
      %s37 = scalar_select %p34, %s35, %s36
      %p40 = pneg %p34
      %p41 = scmp.eq.s32.totalorder %s11, 3
      %p42 = por %p40, %p41
      %p43 = scmp.ne.s32.totalorder %s35, %s38
      %p44 = scmp.eq.s32.totalorder %s11, 0
      %p45 = por %p43, %p44
      %p46 = scmp.ne.s32.totalorder %s35, %s38
      %p47 = scmp.eq.s32.totalorder %s16, 3
      %p48 = por %p46, %p47
      %p49 = scmp.ne.s32.totalorder %s38, %s39
      %p50 = scmp.eq.s32.totalorder %s16, 0
      %p51 = por %p49, %p50
      %p52 = scmp.ne.s32.totalorder %s38, %s39
      %p53 = scmp.eq.s32.totalorder %s17, 3
      %p54 = por %p52, %p53
      %p56 = scmp.ne.s32.totalorder %s39, %s55
      %p57 = scmp.eq.s32.totalorder %s17, 0
      %p58 = por %p56, %p57
      %s59 = ssub.s32 %s18, %s30
      %p60 = scmp.eq.s32.totalorder %s59, 0
      %s62 = sadd.s32 %s61, 1
      %s63 = scalar_select %p60, %s61, %s62
      %p66 = pneg %p60
      %p67 = scmp.eq.s32.totalorder %s11, 3
      %p68 = por %p66, %p67
      %p69 = scmp.ne.s32.totalorder %s61, %s64
      %p70 = scmp.eq.s32.totalorder %s11, 0
      %p71 = por %p69, %p70
      %p72 = scmp.ne.s32.totalorder %s61, %s64
      %p73 = scmp.eq.s32.totalorder %s16, 3
      %p74 = por %p72, %p73
      %p75 = scmp.ne.s32.totalorder %s64, %s65
      %p76 = scmp.eq.s32.totalorder %s16, 0
      %p77 = por %p75, %p76
      %p78 = scmp.ne.s32.totalorder %s64, %s65
      %p79 = scmp.eq.s32.totalorder %s17, 3
      %p80 = por %p78, %p79
      %p82 = scmp.ne.s32.totalorder %s65, %s81
      %p83 = scmp.eq.s32.totalorder %s17, 0
      %p84 = por %p82, %p83
      %s85 = ssub.s32 %s18, %s30
      %p86 = scmp.eq.s32.totalorder %s85, 0
      %s88 = sadd.s32 %s87, 1
      %s89 = scalar_select %p86, %s87, %s88
      %p92 = pneg %p86
      %p93 = scmp.eq.s32.totalorder %s11, 3
      %p94 = por %p92, %p93
      %p95 = scmp.ne.s32.totalorder %s87, %s90
      %p96 = scmp.eq.s32.totalorder %s11, 0
      %p97 = por %p95, %p96
      %p98 = scmp.ne.s32.totalorder %s87, %s90
      %p99 = scmp.eq.s32.totalorder %s16, 3
      %p100 = por %p98, %p99
      %p101 = scmp.ne.s32.totalorder %s90, %s91
      %p102 = scmp.eq.s32.totalorder %s16, 0
      %p103 = por %p101, %p102
      %p104 = scmp.ne.s32.totalorder %s90, %s91
      %p105 = scmp.eq.s32.totalorder %s17, 3
      %p106 = por %p104, %p105
      %p108 = scmp.ne.s32.totalorder %s91, %s107
      %p109 = scmp.eq.s32.totalorder %s17, 0
      %p110 = por %p108, %p109
      %p111 = scmp.le.s32.totalorder 1, %s11
      %p112 = scmp.lt.s32.totalorder %s11, 5
      %p113 = pnand %p111, %p112
      %p114 = pneg %p113
      // Predicated region
      $region9: #{self_attention.1} parent=5 // pred_check
        _
      $region10: #{self_attention.1} parent=5 // pred_check_branch
        %116 = sbr.rel (%p113) target = $region12
      $region11: #{self_attention.1} parent=5 // pred_region
        %s117 = ssub.s32 %s11, 1
      $region12: #{self_attention.1} parent=5 // pred_fallthru
        _
      %p118 = scmp.lt.s32.totalorder %s11, 4
      // Predicated region
      $region13: #{self_attention.1} parent=5 // pred_check
        %p119 = pneg %p118
      $region14: #{self_attention.1} parent=5 // pred_check_branch
        %121 = sbr.rel (%p119) target = $region16
      $region15: #{self_attention.1} parent=5 // pred_region
        // Predicated region
        $region17: #{self_attention.1} parent=15 // pred_check
          %p122 = pneg %p45
        $region18: #{self_attention.1} parent=15 // pred_check_branch
          %124 = sbr.rel (%p122) target = $region20
        $region19: #{self_attention.1} parent=15 // pred_region
          %p125 = scmp.lt.s32.totalorder %s18, 1
          %s126 = scalar_select %p125, %s18, 1
          %p127 = scmp.lt.s32.totalorder %s19, 1
          %s128 = scalar_select %p127, %s19, 1
          %s129 = smul.addr %s126, 2
          %s130 = sadd.s32 %s128, %s129
          %s131 = smul.addr %s130, 4
          %s132 = scalar_lea.vmem %s0, %s131
        $region20: #{self_attention.1} parent=15 // pred_fallthru
          _
        // Predicated region
        $region21: #{self_attention.1} parent=15 // pred_check
          %p133 = pneg %p71
        $region22: #{self_attention.1} parent=15 // pred_check_branch
          %135 = sbr.rel (%p133) target = $region24
        $region23: #{self_attention.1} parent=15 // pred_region
          %p136 = scmp.lt.s32.totalorder %s18, 1
          %s137 = scalar_select %p136, %s18, 1
          %s138 = smul.addr %s137, 2
          %s139 = smul.addr %s138, 4
          %s140 = scalar_lea.vmem %s1, %s139
        $region24: #{self_attention.1} parent=15 // pred_fallthru
          _
      $region16: #{self_attention.1} parent=5 // pred_fallthru
        _
      %p141 = scmp.le.s32.totalorder 1, %s11
      %p142 = scmp.lt.s32.totalorder %s11, 5
      %p143 = pnand %p141, %p142
      %p144 = pneg %p143
      // Predicated region
      $region25: #{self_attention.1} parent=5 // pred_check
        _
      $region26: #{self_attention.1} parent=5 // pred_check_branch
        %146 = sbr.rel (%p143) target = $region28
      $region27: #{self_attention.1} parent=5 // pred_region
        %s147 = ssub.s32 %s11, 1
        %p148 = scmp.lt.s32.totalorder %s20, 1
        %s149 = scalar_select %p148, %s20, 1
        %p150 = scmp.lt.s32.totalorder %s21, 1
        %s151 = scalar_select %p150, %s21, 1
        %s152 = smul.addr %s149, 2
        %s153 = sadd.s32 %s151, %s152
        %s154 = smul.addr %s153, 4
        %s155 = scalar_lea.vmem %s0, %s154
        %p156 = pneg %p51
        %p157 = pneg %p48
        %p158 = scmp.lt.s32.totalorder %s20, 1
        %s159 = scalar_select %p158, %s20, 1
        %s160 = smul.addr %s159, 2
        %s161 = smul.addr %s160, 4
        %s162 = scalar_lea.vmem %s1, %s161
        %p163 = pneg %p77
        %p164 = pneg %p74
        %p165 = pneg %p103
        %p166 = pneg %p100
        %s167 = sand.u32 %s90, 1
        %s168 = scalar_lea.sflag [#allocation4], %s167
        %s169 = sand.u32 %s90, 1
        %s170 = smul.addr %s169, 8
        %s171 = scalar_lea.vmem [#allocation3], %s170
        %p172 = scmp.lt.s32.totalorder %s20, 1
        %s173 = scalar_select %p172, %s20, 1
        %p174 = scmp.lt.s32.totalorder %s21, 1
        %s175 = scalar_select %p174, %s21, 1
        %s176 = smul.addr %s173, 2
        %s177 = sadd.s32 %s175, %s176
        %s178 = smul.addr %s177, 4
        %s179 = scalar_lea.vmem %s0, %s178
        %p180 = scmp.lt.s32.totalorder %s20, 1
        %s181 = scalar_select %p180, %s20, 1
        %s182 = smul.addr %s181, 2
        %s183 = smul.addr %s182, 4
        %s184 = scalar_lea.vmem %s1, %s183
        %p186 = scmp.eq.s32.totalorder %s21, 0
        // Predicated region
        $region29: #{self_attention.1} parent=27 // pred_check
          %p187 = pneg %p186
        $region30: #{self_attention.1} parent=27 // pred_check_branch
          %189 = sbr.rel (%p187) target = $region32
        $region31: #{self_attention.1} parent=27 // pred_region
          %190 = vst [vmem:[#allocation2] sm:$0xff] 0.0
        $region32: #{self_attention.1} parent=27 // pred_fallthru
          _
        %v191 = vld [vmem:[%s179] sm:$0xf]
        %v192 = vld [vmem:[%s184] sm:$0xff]
        %v193 = vpack.c.bf16 %v191, %v191
        %v195 = vcombine.high %v192, %v192
        %v197 = vpack.c.bf16 %v192, %v192
        %v198 = vpack.c.bf16 %v195, %v195
        %199 = vxpose.xlu0.c.b16.start [1/8] %v193, 128
        %200 = vxpose.xlu0.c.b16.cont [2/8] 0, 128
        %201 = vxpose.xlu0.c.b16.cont [3/8] 0, 128
        %202 = vxpose.xlu0.c.b16.cont [4/8] 0, 128
        %203 = vxpose.xlu0.c.b16.cont [5/8] 0, 128
        %204 = vxpose.xlu0.c.b16.cont [6/8] 0, 128
        %205 = vxpose.xlu0.c.b16.cont [7/8] 0, 128
        %206 = vxpose.xlu0.c.b16.end [8/8] 0, 128
        %v207 = vpop.trf.xlu0
        %v208 = vpop.trf.xlu0
        %v209 = vpop.trf.xlu0
        %v210 = vpop.trf.xlu0
        %v211 = vpop.trf.xlu0
        %v212 = vpop.trf.xlu0
        %v213 = vpop.trf.xlu0
        %v214 = vpop.trf.xlu0
        %vm215 = vcmask 31744
        %v217 = vsel %vm215, %v207, 0
        %v220 = vsel %vm215, %v208, 0
        %v223 = vsel %vm215, %v209, 0
        %v226 = vsel %vm215, %v210, 0
        %v229 = vsel %vm215, %v211, 0
        %v232 = vsel %vm215, %v212, 0
        %v235 = vsel %vm215, %v213, 0
        %v238 = vsel %vm215, %v214, 0
        %vm240 = vcmask 1041408
        %v242 = vsel %vm240, %v197, 0
        %v245 = vsel %vm240, %v198, 0
        %247 = vmatprep.subr.bf16.mxu0 %v245
        %248 = vmatpush1.bf16.msra.mxu0 %v242
        %249 = vmatprep.subr.bf16.mxu0 0
        %250 = vmatpush1.bf16.msra.mxu0 0
        %251 = vmatprep.subr.bf16.mxu0 0
        %252 = vmatpush1.bf16.msra.mxu0 0
        %253 = vmatprep.subr.bf16.mxu0 0
        %254 = vmatpush1.bf16.msra.mxu0 0
        %255 = vmatprep.subr.bf16.mxu0 0
        %256 = vmatpush1.bf16.msra.mxu0 0
        %257 = vmatprep.subr.bf16.mxu0 0
        %258 = vmatpush1.bf16.msra.mxu0 0
        %259 = vmatprep.subr.bf16.mxu0 0
        %260 = vmatpush1.bf16.msra.mxu0 0
        %261 = vmatprep.subr.bf16.mxu0 0
        %262 = vmatpush1.bf16.msra.mxu0 0
        %263 = vmatprep.subr.bf16.mxu0 0
        %264 = vmatpush1.bf16.msra.mxu0 0
        %265 = vmatprep.subr.bf16.mxu0 0
        %266 = vmatpush1.bf16.msra.mxu0 0
        %267 = vmatprep.subr.bf16.mxu0 0
        %268 = vmatpush1.bf16.msra.mxu0 0
        %269 = vmatprep.subr.bf16.mxu0 0
        %270 = vmatpush1.bf16.msra.mxu0 0
        %271 = vmatprep.subr.bf16.mxu0 0
        %272 = vmatpush1.bf16.msra.mxu0 0
        %273 = vmatprep.subr.bf16.mxu0 0
        %274 = vmatpush1.bf16.msra.mxu0 0
        %275 = vmatprep.subr.bf16.mxu0 0
        %276 = vmatpush1.bf16.msra.mxu0 0
        %277 = vmatprep.subr.bf16.mxu0 0
        %278 = vmatpush1.bf16.msra.mxu0 0
        %279 = vmatprep.mubr.bf16.mxu0 0
        %280 = vmatmul.mubr.bf16.gmra.mrb[0].mxu0 %v217
        %v281 = vpop.f32.mrb[0].mxu0
        %v282 = vadd.f32 0.0, %v281
        %v283 = vpop.f32.mrb[0].mxu0
        %v284 = vadd.f32 0.0, %v283
        %v285 = vpop.f32.mrb[0].mxu0
        %v286 = vadd.f32 0.0, %v285
        %v287 = vpop.f32.mrb[0].mxu0
        %v288 = vadd.f32 0.0, %v287
        %289 = vmatprep.mubr.bf16.mxu0 0
        %290 = vmatmul.mubr.bf16.gmra.mrb[0].mxu0 %v220
        %v291 = vpop.f32.mrb[0].mxu0
        %v292 = vadd.f32 0.0, %v291
        %v293 = vpop.f32.mrb[0].mxu0
        %v294 = vadd.f32 0.0, %v293
        %v295 = vpop.f32.mrb[0].mxu0
        %v296 = vadd.f32 0.0, %v295
        %v297 = vpop.f32.mrb[0].mxu0
        %v298 = vadd.f32 0.0, %v297
        %299 = vmatprep.mubr.bf16.mxu0 0
        %300 = vmatmul.mubr.bf16.gmra.mrb[0].mxu0 %v223
        %v301 = vpop.f32.mrb[0].mxu0
        %v302 = vadd.f32 0.0, %v301
        %v303 = vpop.f32.mrb[0].mxu0
        %v304 = vadd.f32 0.0, %v303
        %v305 = vpop.f32.mrb[0].mxu0
        %v306 = vadd.f32 0.0, %v305
        %v307 = vpop.f32.mrb[0].mxu0
        %v308 = vadd.f32 0.0, %v307
        %309 = vmatprep.mubr.bf16.mxu0 0
        %310 = vmatmul.mubr.bf16.gmra.mrb[0].mxu0 %v226
        %v311 = vpop.f32.mrb[0].mxu0
        %v312 = vadd.f32 0.0, %v311
        %v313 = vpop.f32.mrb[0].mxu0
        %v314 = vadd.f32 0.0, %v313
        %v315 = vpop.f32.mrb[0].mxu0
        %v316 = vadd.f32 0.0, %v315
        %v317 = vpop.f32.mrb[0].mxu0
        %v318 = vadd.f32 0.0, %v317
        %319 = vmatprep.mubr.bf16.mxu0 0
        %320 = vmatmul.mubr.bf16.gmra.mrb[0].mxu0 %v229
        %v321 = vpop.f32.mrb[0].mxu0
        %v322 = vadd.f32 0.0, %v321
        %v323 = vpop.f32.mrb[0].mxu0
        %v324 = vadd.f32 0.0, %v323
        %v325 = vpop.f32.mrb[0].mxu0
        %v326 = vadd.f32 0.0, %v325
        %v327 = vpop.f32.mrb[0].mxu0
        %v328 = vadd.f32 0.0, %v327
        %329 = vmatprep.mubr.bf16.mxu0 0
        %330 = vmatmul.mubr.bf16.gmra.mrb[0].mxu0 %v232
        %v331 = vpop.f32.mrb[0].mxu0
        %v332 = vadd.f32 0.0, %v331
        %v333 = vpop.f32.mrb[0].mxu0
        %v334 = vadd.f32 0.0, %v333
        %v335 = vpop.f32.mrb[0].mxu0
        %v336 = vadd.f32 0.0, %v335
        %v337 = vpop.f32.mrb[0].mxu0
        %v338 = vadd.f32 0.0, %v337
        %339 = vmatprep.mubr.bf16.mxu0 0
        %340 = vmatmul.mubr.bf16.gmra.mrb[0].mxu0 %v235
        %v341 = vpop.f32.mrb[0].mxu0
        %v342 = vadd.f32 0.0, %v341
        %v343 = vpop.f32.mrb[0].mxu0
        %v344 = vadd.f32 0.0, %v343
        %v345 = vpop.f32.mrb[0].mxu0
        %v346 = vadd.f32 0.0, %v345
        %v347 = vpop.f32.mrb[0].mxu0
        %v348 = vadd.f32 0.0, %v347
        %349 = vmatprep.mubr.bf16.mxu0 0
        %350 = vmatmul.mubr.bf16.gmra.mrb[0].mxu0 %v238
        %v351 = vpop.f32.mrb[0].mxu0
        %v352 = vadd.f32 0.0, %v351
        %v353 = vpop.f32.mrb[0].mxu0
        %v354 = vadd.f32 0.0, %v353
        %v355 = vpop.f32.mrb[0].mxu0
        %v356 = vadd.f32 0.0, %v355
        %v357 = vpop.f32.mrb[0].mxu0
        %v358 = vadd.f32 0.0, %v357
        %359 = vdwg.mxu0
        %v360 = vmax.f32 %v282, %v284
        %361 = vmax.xlane.f32.xlu0 %v360
        %v362 = vpop.xlane.xlu0 %361
        %v363 = vmax.f32 %v286, %v288
        %364 = vmax.xlane.f32.xlu0 %v363
        %v365 = vpop.xlane.xlu0 %364
        %v366 = vmax.f32 %v292, %v294
        %367 = vmax.xlane.f32.xlu0 %v366
        %v368 = vpop.xlane.xlu0 %367
        %v369 = vmax.f32 %v296, %v298
        %370 = vmax.xlane.f32.xlu0 %v369
        %v371 = vpop.xlane.xlu0 %370
        %v372 = vmax.f32 %v302, %v304
        %373 = vmax.xlane.f32.xlu0 %v372
        %v374 = vpop.xlane.xlu0 %373
        %v375 = vmax.f32 %v306, %v308
        %376 = vmax.xlane.f32.xlu0 %v375
        %v377 = vpop.xlane.xlu0 %376
        %v378 = vmax.f32 %v312, %v314
        %379 = vmax.xlane.f32.xlu0 %v378
        %v380 = vpop.xlane.xlu0 %379
        %v381 = vmax.f32 %v316, %v318
        %382 = vmax.xlane.f32.xlu0 %v381
        %v383 = vpop.xlane.xlu0 %382
        %v384 = vmax.f32 %v322, %v324
        %385 = vmax.xlane.f32.xlu0 %v384
        %v386 = vpop.xlane.xlu0 %385
        %v387 = vmax.f32 %v326, %v328
        %388 = vmax.xlane.f32.xlu0 %v387
        %v389 = vpop.xlane.xlu0 %388
        %v390 = vmax.f32 %v332, %v334
        %391 = vmax.xlane.f32.xlu0 %v390
        %v392 = vpop.xlane.xlu0 %391
        %v393 = vmax.f32 %v336, %v338
        %394 = vmax.xlane.f32.xlu0 %v393
        %v395 = vpop.xlane.xlu0 %394
        %v396 = vmax.f32 %v342, %v344
        %397 = vmax.xlane.f32.xlu0 %v396
        %v398 = vpop.xlane.xlu0 %397
        %v399 = vmax.f32 %v346, %v348
        %400 = vmax.xlane.f32.xlu0 %v399
        %v401 = vpop.xlane.xlu0 %400
        %v402 = vmax.f32 %v352, %v354
        %403 = vmax.xlane.f32.xlu0 %v402
        %v404 = vpop.xlane.xlu0 %403
        %v405 = vmax.f32 %v356, %v358
        %406 = vmax.xlane.f32.xlu0 %v405
        %v407 = vpop.xlane.xlu0 %406
        %v408 = vsub.f32 %v282, %v362
        %v409 = vsub.f32 %v284, %v362
        %v410 = vsub.f32 %v286, %v365
        %v411 = vsub.f32 %v288, %v365
        %v412 = vsub.f32 %v292, %v368
        %v413 = vsub.f32 %v294, %v368
        %v414 = vsub.f32 %v296, %v371
        %v415 = vsub.f32 %v298, %v371
        %v416 = vsub.f32 %v302, %v374
        %v417 = vsub.f32 %v304, %v374
        %v418 = vsub.f32 %v306, %v377
        %v419 = vsub.f32 %v308, %v377
        %v420 = vsub.f32 %v312, %v380
        %v421 = vsub.f32 %v314, %v380
        %v422 = vsub.f32 %v316, %v383
        %v423 = vsub.f32 %v318, %v383
        %v424 = vsub.f32 %v322, %v386
        %v425 = vsub.f32 %v324, %v386
        %v426 = vsub.f32 %v326, %v389
        %v427 = vsub.f32 %v328, %v389
        %v428 = vsub.f32 %v332, %v392
        %v429 = vsub.f32 %v334, %v392
        %v430 = vsub.f32 %v336, %v395
        %v431 = vsub.f32 %v338, %v395
        %v432 = vsub.f32 %v342, %v398
        %v433 = vsub.f32 %v344, %v398
        %v434 = vsub.f32 %v346, %v401
        %v435 = vsub.f32 %v348, %v401
        %v436 = vsub.f32 %v352, %v404
        %v437 = vsub.f32 %v354, %v404
        %v438 = vsub.f32 %v356, %v407
        %v439 = vsub.f32 %v358, %v407
        %v440 = vmul.f32 %v408, 1.442695
        %v441 = vpow.pop %v440
        %v442 = vmul.f32 %v409, 1.442695
        %v443 = vpow.pop %v442
        %v444 = vmul.f32 %v410, 1.442695
        %v445 = vpow.pop %v444
        %v446 = vmul.f32 %v411, 1.442695
        %v447 = vpow.pop %v446
        %v448 = vmul.f32 %v412, 1.442695
        %v449 = vpow.pop %v448
        %v450 = vmul.f32 %v413, 1.442695
        %v451 = vpow.pop %v450
        %v452 = vmul.f32 %v414, 1.442695
        %v453 = vpow.pop %v452
        %v454 = vmul.f32 %v415, 1.442695
        %v455 = vpow.pop %v454
        %v456 = vmul.f32 %v416, 1.442695
        %v457 = vpow.pop %v456
        %v458 = vmul.f32 %v417, 1.442695
        %v459 = vpow.pop %v458
        %v460 = vmul.f32 %v418, 1.442695
        %v461 = vpow.pop %v460
        %v462 = vmul.f32 %v419, 1.442695
        %v463 = vpow.pop %v462
        %v464 = vmul.f32 %v420, 1.442695
        %v465 = vpow.pop %v464
        %v466 = vmul.f32 %v421, 1.442695
        %v467 = vpow.pop %v466
        %v468 = vmul.f32 %v422, 1.442695
        %v469 = vpow.pop %v468
        %v470 = vmul.f32 %v423, 1.442695
        %v471 = vpow.pop %v470
        %v472 = vmul.f32 %v424, 1.442695
        %v473 = vpow.pop %v472
        %v474 = vmul.f32 %v425, 1.442695
        %v475 = vpow.pop %v474
        %v476 = vmul.f32 %v426, 1.442695
        %v477 = vpow.pop %v476
        %v478 = vmul.f32 %v427, 1.442695
        %v479 = vpow.pop %v478
        %v480 = vmul.f32 %v428, 1.442695
        %v481 = vpow.pop %v480
        %v482 = vmul.f32 %v429, 1.442695
        %v483 = vpow.pop %v482
        %v484 = vmul.f32 %v430, 1.442695
        %v485 = vpow.pop %v484
        %v486 = vmul.f32 %v431, 1.442695
        %v487 = vpow.pop %v486
        %v488 = vmul.f32 %v432, 1.442695
        %v489 = vpow.pop %v488
        %v490 = vmul.f32 %v433, 1.442695
        %v491 = vpow.pop %v490
        %v492 = vmul.f32 %v434, 1.442695
        %v493 = vpow.pop %v492
        %v494 = vmul.f32 %v435, 1.442695
        %v495 = vpow.pop %v494
        %v496 = vmul.f32 %v436, 1.442695
        %v497 = vpow.pop %v496
        %v498 = vmul.f32 %v437, 1.442695
        %v499 = vpow.pop %v498
        %v500 = vmul.f32 %v438, 1.442695
        %v501 = vpow.pop %v500
        %v502 = vmul.f32 %v439, 1.442695
        %v503 = vpow.pop %v502
        %v504 = vadd.f32 %v441, %v443
        %505 = vadd.xlane.f32.xlu0 %v504
        %v506 = vpop.xlane.xlu0 %505
        %v507 = vadd.f32 %v445, %v447
        %508 = vadd.xlane.f32.xlu0 %v507
        %v509 = vpop.xlane.xlu0 %508
        %v510 = vadd.f32 %v449, %v451
        %511 = vadd.xlane.f32.xlu0 %v510
        %v512 = vpop.xlane.xlu0 %511
        %v513 = vadd.f32 %v453, %v455
        %514 = vadd.xlane.f32.xlu0 %v513
        %v515 = vpop.xlane.xlu0 %514
        %v516 = vadd.f32 %v457, %v459
        %517 = vadd.xlane.f32.xlu0 %v516
        %v518 = vpop.xlane.xlu0 %517
        %v519 = vadd.f32 %v461, %v463
        %520 = vadd.xlane.f32.xlu0 %v519
        %v521 = vpop.xlane.xlu0 %520
        %v522 = vadd.f32 %v465, %v467
        %523 = vadd.xlane.f32.xlu0 %v522
        %v524 = vpop.xlane.xlu0 %523
        %v525 = vadd.f32 %v469, %v471
        %526 = vadd.xlane.f32.xlu0 %v525
        %v527 = vpop.xlane.xlu0 %526
        %v528 = vadd.f32 %v473, %v475
        %529 = vadd.xlane.f32.xlu0 %v528
        %v530 = vpop.xlane.xlu0 %529
        %v531 = vadd.f32 %v477, %v479
        %532 = vadd.xlane.f32.xlu0 %v531
        %v533 = vpop.xlane.xlu0 %532
        %v534 = vadd.f32 %v481, %v483
        %535 = vadd.xlane.f32.xlu0 %v534
        %v536 = vpop.xlane.xlu0 %535
        %v537 = vadd.f32 %v485, %v487
        %538 = vadd.xlane.f32.xlu0 %v537
        %v539 = vpop.xlane.xlu0 %538
        %v540 = vadd.f32 %v489, %v491
        %541 = vadd.xlane.f32.xlu0 %v540
        %v542 = vpop.xlane.xlu0 %541
        %v543 = vadd.f32 %v493, %v495
        %544 = vadd.xlane.f32.xlu0 %v543
        %v545 = vpop.xlane.xlu0 %544
        %v546 = vadd.f32 %v497, %v499
        %547 = vadd.xlane.f32.xlu0 %v546
        %v548 = vpop.xlane.xlu0 %547
        %v549 = vadd.f32 %v501, %v503
        %550 = vadd.xlane.f32.xlu0 %v549
        %v551 = vpop.xlane.xlu0 %550
        %v552 = vrcp.pop %v506
        %v553 = vrcp.pop %v509
        %v554 = vrcp.pop %v512
        %v555 = vrcp.pop %v515
        %v556 = vrcp.pop %v518
        %v557 = vrcp.pop %v521
        %v558 = vrcp.pop %v524
        %v559 = vrcp.pop %v527
        %v560 = vrcp.pop %v530
        %v561 = vrcp.pop %v533
        %v562 = vrcp.pop %v536
        %v563 = vrcp.pop %v539
        %v564 = vrcp.pop %v542
        %v565 = vrcp.pop %v545
        %v566 = vrcp.pop %v548
        %v567 = vrcp.pop %v551
        %v568 = vmul.f32 %v441, %v552
        %v569 = vmul.f32 %v443, %v552
        %v570 = vmul.f32 %v445, %v553
        %v571 = vmul.f32 %v447, %v553
        %v572 = vmul.f32 %v449, %v554
        %v573 = vmul.f32 %v451, %v554
        %v574 = vmul.f32 %v453, %v555
        %v575 = vmul.f32 %v455, %v555
        %v576 = vmul.f32 %v457, %v556
        %v577 = vmul.f32 %v459, %v556
        %v578 = vmul.f32 %v461, %v557
        %v579 = vmul.f32 %v463, %v557
        %v580 = vmul.f32 %v465, %v558
        %v581 = vmul.f32 %v467, %v558
        %v582 = vmul.f32 %v469, %v559
        %v583 = vmul.f32 %v471, %v559
        %v584 = vmul.f32 %v473, %v560
        %v585 = vmul.f32 %v475, %v560
        %v586 = vmul.f32 %v477, %v561
        %v587 = vmul.f32 %v479, %v561
        %v588 = vmul.f32 %v481, %v562
        %v589 = vmul.f32 %v483, %v562
        %v590 = vmul.f32 %v485, %v563
        %v591 = vmul.f32 %v487, %v563
        %v592 = vmul.f32 %v489, %v564
        %v593 = vmul.f32 %v491, %v564
        %v594 = vmul.f32 %v493, %v565
        %v595 = vmul.f32 %v495, %v565
        %v596 = vmul.f32 %v497, %v566
        %v597 = vmul.f32 %v499, %v566
        %v598 = vmul.f32 %v501, %v567
        %v599 = vmul.f32 %v503, %v567
        %v600 = vpack.c.bf16 %v570, %v568
        %v601 = vpack.c.bf16 %v571, %v569
        %v602 = vpack.c.bf16 %v574, %v572
        %v603 = vpack.c.bf16 %v575, %v573
        %v604 = vpack.c.bf16 %v578, %v576
        %v605 = vpack.c.bf16 %v579, %v577
        %v606 = vpack.c.bf16 %v582, %v580
        %v607 = vpack.c.bf16 %v583, %v581
        %v608 = vpack.c.bf16 %v586, %v584
        %v609 = vpack.c.bf16 %v587, %v585
        %v610 = vpack.c.bf16 %v590, %v588
        %v611 = vpack.c.bf16 %v591, %v589
        %v612 = vpack.c.bf16 %v594, %v592
        %v613 = vpack.c.bf16 %v595, %v593
        %v614 = vpack.c.bf16 %v598, %v596
        %v615 = vpack.c.bf16 %v599, %v597
        %v616 = vld [vmem:[#allocation2] sm:$0xff]
        %617 = vmatprep.subr.bf16.mxu0 %v601
        %618 = vmatpush1.bf16.msra.mxu0 %v600
        %619 = vmatprep.subr.bf16.mxu0 %v603
        %620 = vmatpush1.bf16.msra.mxu0 %v602
        %621 = vmatprep.subr.bf16.mxu0 %v605
        %622 = vmatpush1.bf16.msra.mxu0 %v604
        %623 = vmatprep.subr.bf16.mxu0 %v607
        %624 = vmatpush1.bf16.msra.mxu0 %v606
        %625 = vmatprep.subr.bf16.mxu0 %v609
        %626 = vmatpush1.bf16.msra.mxu0 %v608
        %627 = vmatprep.subr.bf16.mxu0 %v611
        %628 = vmatpush1.bf16.msra.mxu0 %v610
        %629 = vmatprep.subr.bf16.mxu0 %v613
        %630 = vmatpush1.bf16.msra.mxu0 %v612
        %631 = vmatprep.subr.bf16.mxu0 %v615
        %632 = vmatpush1.bf16.msra.mxu0 %v614
        %633 = vmatprep.subr.bf16.mxu0 0
        %634 = vmatpush1.bf16.msra.mxu0 0
        %635 = vmatprep.subr.bf16.mxu0 0
        %636 = vmatpush1.bf16.msra.mxu0 0
        %637 = vmatprep.subr.bf16.mxu0 0
        %638 = vmatpush1.bf16.msra.mxu0 0
        %639 = vmatprep.subr.bf16.mxu0 0
        %640 = vmatpush1.bf16.msra.mxu0 0
        %641 = vmatprep.subr.bf16.mxu0 0
        %642 = vmatpush1.bf16.msra.mxu0 0
        %643 = vmatprep.subr.bf16.mxu0 0
        %644 = vmatpush1.bf16.msra.mxu0 0
        %645 = vmatprep.subr.bf16.mxu0 0
        %646 = vmatpush1.bf16.msra.mxu0 0
        %647 = vmatprep.subr.bf16.mxu0 0
        %648 = vmatpush1.bf16.msra.mxu0 0
        %649 = vmatprep.mubr.bf16.mxu0 0
        %650 = vmatmul.mubr.bf16.gmra.mrb[0].mxu0 %v193
        %v651 = vpop.f32.mrb[0].mxu0
        %v652 = vadd.f32 0.0, %v651
        %v653 = vpop.f32.mrb[0].mxu0
        %v654 = vadd.f32 0.0, %v653
        %v655 = vpop.f32.mrb[0].mxu0
        %v656 = vpop.f32.mrb[0].mxu0
        %657 = vdwg.mxu0
        %v660 = vcombine.low %v652, %v654
        %v662 = vadd.f32 %v616, %v660
        %663 = vst [vmem:[#allocation2] sm:$0xff] %v662
        %p664 = scmp.eq.s32.totalorder %s21, 1
        // Predicated region
        $region33: #{self_attention.1} parent=27 // pred_check
          %p665 = pneg %p664
        $region34: #{self_attention.1} parent=27 // pred_check_branch
          %667 = sbr.rel (%p665) target = $region36
        $region35: #{self_attention.1} parent=27 // pred_region
          %v668 = vld [vmem:[#allocation2] sm:$0xff]
          %669 = vst [vmem:[%s171] sm:$0xff] %v668
        $region36: #{self_attention.1} parent=27 // pred_fallthru
          _
        %s670 = sand.u32 %s90, 1
        %s671 = scalar_lea.sflag [#allocation4], %s670
        %s672 = sand.u32 %s90, 1
        %s673 = smul.addr %s672, 8
        %s674 = scalar_lea.vmem [#allocation3], %s673
        // Predicated region
        $region37: #{self_attention.1} parent=27 // pred_check
          %p675 = pneg %p100
        $region38: #{self_attention.1} parent=27 // pred_check_branch
          %677 = sbr.rel (%p675) target = $region40
        $region39: #{self_attention.1} parent=27 // pred_region
          %s679 = ssub.s32 128, 128
          %680 = vsyncadd %s671, %s679
          %s681 = smul.addr %s20, 2
          %s682 = smul.addr %s681, 64
          %s683 = scalar_lea.hbm %s2, %s682
          %s685 = sshll.u32 %s674, 4
          %s686 = int_to_ptr.vmem [resolvable:$true] %s685
          %688 = dma.vmem_to_hbm [thread:$0]  %s686, 128, %s683, %s671
        $region40: #{self_attention.1} parent=27 // pred_fallthru
          _
      $region28: #{self_attention.1} parent=5 // pred_fallthru
        _
      %p689 = scmp.le.s32.totalorder 2, %s11
      // Predicated region
      $region41: #{self_attention.1} parent=5 // pred_check
        %p690 = pneg %p689
      $region42: #{self_attention.1} parent=5 // pred_check_branch
        %692 = sbr.rel (%p690) target = $region44
      $region43: #{self_attention.1} parent=5 // pred_region
        %s693 = ssub.s32 %s11, 2
        // Predicated region
        $region45: #{self_attention.1} parent=43 // pred_check
          %p694 = pneg %p106
        $region46: #{self_attention.1} parent=43 // pred_check_branch
          %696 = sbr.rel (%p694) target = $region48
        $region47: #{self_attention.1} parent=43 // pred_region
          %s697 = sand.u32 %s91, 1
          %s698 = scalar_lea.sflag [#allocation4], %s697
          %s699 = sand.u32 %s91, 1
          %s700 = smul.addr %s699, 8
          %s701 = scalar_lea.vmem [#allocation3], %s700
          %702 = dma.done %s698, 128
        $region48: #{self_attention.1} parent=43 // pred_fallthru
          _
      $region44: #{self_attention.1} parent=5 // pred_fallthru
        _
    $region6: #{self_attention.1} parent=1 // loop_footer
      %s15 = sadd.s32 1, %s11
    $region7: #{self_attention.1} parent=1 // loop_footer_branch
      %10 = sbr.rel target = $region3
    $region8: #{self_attention.1} parent=1 // loop_exit
      _
    %703 = vsyncpa [#allocation4], 1
    %s704 = scalar_lea.sflag [#allocation4], 1
    %705 = vsyncpa %s704, 1

</llo_original>
